<compile_context>
chip_gen: v7x
topology: tpu7x:2x2x1
jax: 0.10.0
libtpu: 0.0.40
codegen_flags: <defaults>
</compile_context>

<pallas_src>
import functools

import jax
import jax.numpy as jnp
from jax.experimental import pallas as pl
from jax.experimental.pallas import tpu as pltpu

LANES = 128
MAX_TILE_ROWS = 2048   # (2048,128): bf16 tile 512 KiB / f32 1 MiB, int8 256 KiB
_SINGLE_TC_KINDS = ("v5 lite", "v5e", "v5litepod", "v6 lite", "v6e", "v6litepod")


def _round_up(x, m):
    return (x + m - 1) // m * m


@functools.lru_cache(maxsize=1)
def _num_core_splits():
    # 2-way "parallel" leading axis only pays off with two TensorCores per
    # device (v4/v5p megacore, v7x).  On single-TC chips (v5e/v6e) it is just a
    # serial loop that adds a phantom-tile DMA and a duplicated epilogue.
    try:
        kind = jax.devices()[0].device_kind.lower()
    except Exception:
        return 2
    if any(s in kind for s in _SINGLE_TC_KINDS):
        return 1
    return 2


def wce_kernel(pred_ref, tgt_ref, nll_out, tnll_out, t_out,
               nll_acc, tnll_acc, t_acc, *, n_valid, tile_rows):
    # pred_ref: VMEM (tile_rows,128) prediction p (any float dtype)
    # tgt_ref:  VMEM (tile_rows,128) class index {0,1} (any int dtype)
    # *_out:    VMEM (1,1,128) per-core lane partials of sum(nll), sum(t*nll), sum(t)
    # *_acc:    VMEM (8,128) f32 one-vreg running accumulators
    c = pl.program_id(0)
    k = pl.program_id(1)
    nk = pl.num_programs(1)

    @pl.when(k == 0)
    def _():
        nll_acc[...] = jnp.zeros_like(nll_acc)
        tnll_acc[...] = jnp.zeros_like(tnll_acc)
        t_acc[...] = jnp.zeros_like(t_acc)

    step = c * nk + k                       # logical (unclamped) step
    tile_elems = tile_rows * LANES
    is_full = (step + 1) * tile_elems <= n_valid   # scalar boundary check

    def softplus_nll(p, t):
        # logits = [1-p, p] => nll = softplus(logit_other - logit_target)
        #   t==1 -> softplus(1-2p), t==0 -> softplus(2p-1)
        delta = (2.0 * p - 1.0) * (1.0 - 2.0 * t)
        return jnp.maximum(delta, 0.0) + jnp.log1p(jnp.exp(-jnp.abs(delta)))

    def reduce_to_vreg(x):
        # (tile_rows,128)->(tile_rows//8,8,128) is layout-preserving (splits the
        # sublane axis at a multiple of 8); the axis-0 sum is pure VALU adds.
        return jnp.sum(x.reshape(tile_rows // 8, 8, LANES), axis=0)

    def accumulate(nll, t):
        nll_acc[...] += reduce_to_vreg(nll)
        tnll_acc[...] += reduce_to_vreg(t * nll)
        t_acc[...] += reduce_to_vreg(t)

    @pl.when(is_full)
    def _():
        # Interior tile: mask-free fast path.
        p = pred_ref[...].astype(jnp.float32)
        t = tgt_ref[...].astype(jnp.float32)
        accumulate(softplus_nll(p, t), t)

    @pl.when(jnp.logical_not(is_full))
    def _():
        # Boundary / phantom tile: mask (a) the ragged tail of the flat input,
        # (b) OOB garbage of a partial last block, (c) clamped phantom steps.
        row = jax.lax.broadcasted_iota(jnp.int32, (tile_rows, LANES), 0)
        lane = jax.lax.broadcasted_iota(jnp.int32, (tile_rows, LANES), 1)
        gidx = (step * tile_rows + row) * LANES + lane
        valid = gidx < n_valid
        # Sanitize before the transcendentals: padded/phantom data may be
        # NaN/Inf and 0*NaN would poison the partial sums.
        p = jnp.where(valid, pred_ref[...].astype(jnp.float32), 0.0)
        t = jnp.where(valid, tgt_ref[...].astype(jnp.float32), 0.0)
        nll = jnp.where(valid, softplus_nll(p, t), 0.0)
        accumulate(nll, t)

    @pl.when(k == nk - 1)
    def _():
        # Single sublane (XLU) reduction at the very end; lane-dense (1,128) store.
        nll_out[0] = jnp.sum(nll_acc[...], axis=0, keepdims=True)
        tnll_out[0] = jnp.sum(tnll_acc[...], axis=0, keepdims=True)
        t_out[0] = jnp.sum(t_acc[...], axis=0, keepdims=True)


def wce_loss(pred, target, class_weight, *, max_tile_rows=MAX_TILE_ROWS):
    """pred: (N,1,H,W) float (f32/bf16), target: (N,H,W) int class-ids {0,1}."""
    N, C, H, W = pred.shape
    assert C == 1, "WCELoss expects a single-channel prediction"
    assert max_tile_rows % 32 == 0
    L = N * H * W

    pf = pred.reshape(-1)
    tf = target.reshape(-1)
    rem = L % LANES
    if rem:
        # TODO(synk): jnp.pad materializes a copy; keep N*H*W lane-aligned to skip it.
        pf = jnp.pad(pf, (0, LANES - rem))
        tf = jnp.pad(tf, (0, LANES - rem))
    rows = pf.shape[0] // LANES
    pf = pf.reshape(rows, LANES)
    tf = tf.reshape(rows, LANES)

    # Multiple of 32 satisfies int8 (32,128) / bf16 (16,128) sublane packing.
    tile_rows = min(max_tile_rows, _round_up(rows, 32))
    total_steps = pl.cdiv(rows, tile_rows)
    num_splits = min(_num_core_splits(), total_steps)
    k_steps = pl.cdiv(total_steps, num_splits)

    def data_map(c, k):
        # Clamp phantom trailing steps so the DMA never leaves the array; the
        # kernel masks them out via the (unclamped) logical step index.
        return (jnp.minimum(c * k_steps + k, total_steps - 1), 0)

    kernel = functools.partial(wce_kernel, n_valid=L, tile_rows=tile_rows)

    s_nll, s_tnll, s_t = pl.pallas_call(
        kernel,
        out_shape=(
            jax.ShapeDtypeStruct((num_splits, 1, LANES), jnp.float32),
            jax.ShapeDtypeStruct((num_splits, 1, LANES), jnp.float32),
            jax.ShapeDtypeStruct((num_splits, 1, LANES), jnp.float32),
        ),
        grid=(num_splits, k_steps),
        in_specs=[
            pl.BlockSpec((tile_rows, LANES), data_map),        # pred tile
            pl.BlockSpec((tile_rows, LANES), data_map),        # target tile
        ],
        out_specs=(
            pl.BlockSpec((1, 1, LANES), lambda c, k: (c, 0, 0)),
            pl.BlockSpec((1, 1, LANES), lambda c, k: (c, 0, 0)),
            pl.BlockSpec((1, 1, LANES), lambda c, k: (c, 0, 0)),
        ),
        scratch_shapes=[
            pltpu.VMEM((8, LANES), jnp.float32),   # sum(nll)   accumulator (1 vreg)
            pltpu.VMEM((8, LANES), jnp.float32),   # sum(t*nll) accumulator (1 vreg)
            pltpu.VMEM((8, LANES), jnp.float32),   # sum(t)     accumulator (1 vreg)
        ],
        compiler_params=pltpu.CompilerParams(
            dimension_semantics=("parallel", "arbitrary")),
    )(pf, tf)

    # Fold class weights on the host (tiny):
    #   num = sum_i w[t_i]*nll_i = w0*S_nll + (w1-w0)*S_{t*nll}
    #   den = sum_i w[t_i]       = w0*L     + (w1-w0)*S_t
    w0 = class_weight[0].astype(jnp.float32)
    dw = class_weight[1].astype(jnp.float32) - w0
    num = w0 * jnp.sum(s_nll) + dw * jnp.sum(s_tnll)
    den = w0 * L + dw * jnp.sum(s_t)
    return num / den


def wce_ref(pred, target, class_weight):
    """Pure-JAX reference of the same weighted-CE semantics."""
    p = pred.reshape(-1).astype(jnp.float32)
    t = target.reshape(-1).astype(jnp.int32)
    logits = jnp.stack([1.0 - p, p], axis=-1)
    logp = jax.nn.log_softmax(logits, axis=-1)
    nll = -jnp.take_along_axis(logp, t[:, None], axis=-1)[:, 0]
    w = class_weight[t]
    return jnp.sum(w * nll) / jnp.sum(w)


if __name__ == "__main__":
    key = jax.random.PRNGKey(0)
    class_weight = jnp.array([0.05, 1.0], dtype=jnp.float32)

    def check(pred, target, **kw):
        loss = jax.block_until_ready(wce_loss(pred, target, class_weight, **kw))
        ref = wce_ref(pred.astype(jnp.float32), target, class_weight)
        assert jnp.allclose(loss, ref, rtol=1e-5, atol=1e-5), (loss, ref)

    # 1) Module-shaped small case (single partial tile -> masked path), compact dtypes.
    k1, k2 = jax.random.split(key)
    pred = jax.random.uniform(k1, (2, 1, 16, 16), dtype=jnp.float32).astype(jnp.bfloat16)
    target = jax.random.randint(k2, (2, 16, 16), 0, 2, dtype=jnp.int32).astype(jnp.int8)
    check(pred, target)

    # 2) Exactly one full tile (mask-free fast path), f32/int32 inputs.
    k3, k4 = jax.random.split(k1)
    pred2 = jax.random.uniform(k3, (1, 1, 64, 64), dtype=jnp.float32)
    target2 = jax.random.randint(k4, (1, 64, 64), 0, 2, dtype=jnp.int32)
    check(pred2, target2)

    # 3) Several steps with a ragged tail: full interior tiles + masked boundary
    #    tile (+ clamped phantom step when the 2-way core split is active).
    k5, k6 = jax.random.split(k3)
    pred3 = jax.random.uniform(k5, (2, 1, 72, 64), dtype=jnp.float32).astype(jnp.bfloat16)
    target3 = jax.random.randint(k6, (2, 72, 64), 0, 2, dtype=jnp.int32).astype(jnp.int8)
    check(pred3, target3, max_tile_rows=32)

    print("KERNEL_OK")
</pallas_src>

<mosaic_0001>
module attributes {stable_mosaic.version = 11 : i64} {
  func.func @wce_kernel(%arg0: i32, %arg1: i32, %arg2: memref<32x128xbf16, #tpu.memory_space<vmem>>, %arg3: memref<32x128xi8, #tpu.memory_space<vmem>>, %arg4: memref<1x1x128xf32, #tpu.memory_space<vmem>>, %arg5: memref<1x1x128xf32, #tpu.memory_space<vmem>>, %arg6: memref<1x1x128xf32, #tpu.memory_space<vmem>>, %arg7: memref<8x128xf32, #tpu.memory_space<vmem>>, %arg8: memref<8x128xf32, #tpu.memory_space<vmem>>, %arg9: memref<8x128xf32, #tpu.memory_space<vmem>>) attributes {dimension_semantics = [#tpu.dimension_semantics<parallel>, #tpu.dimension_semantics<arbitrary>], iteration_bounds = array<i64: 1, 1>, scalar_prefetch = 0 : i64, scratch_operands = 3 : i64, tpu.core_type = #tpu.core_type<tc>, window_params = [{transform_indices = @transform_0, window_bounds = array<i64: 32, 128>}, {transform_indices = @transform_1, window_bounds = array<i64: 32, 128>}, {transform_indices = @transform_2, window_bounds = array<i64: 1, 1, 128>}, {transform_indices = @transform_3, window_bounds = array<i64: 1, 1, 128>}, {transform_indices = @transform_4, window_bounds = array<i64: 1, 1, 128>}]} {
    %c0_i32 = arith.constant 0 : i32
    %0 = arith.cmpi eq, %arg1, %c0_i32 : i32
    %1 = arith.extui %0 : i1 to i32
    %c0_i32_0 = arith.constant 0 : i32
    %2 = arith.cmpi ne, %1, %c0_i32_0 : i32
    scf.if %2 {
      %cst = arith.constant 0.000000e+00 : f32
      %16 = vector.broadcast %cst : f32 to vector<8x128xf32>
      %c0 = arith.constant 0 : index
      %c0_6 = arith.constant 0 : index
      %17 = vector.load %arg7[%c0, %c0_6] : memref<8x128xf32, #tpu.memory_space<vmem>>, vector<8x128xf32>
      tpu.vector_store %arg7[%c0, %c0_6], %16 {strides = array<i32>} : memref<8x128xf32, #tpu.memory_space<vmem>>, vector<8x128xf32>,
      %cst_7 = arith.constant 0.000000e+00 : f32
      %18 = vector.broadcast %cst_7 : f32 to vector<8x128xf32>
      %c0_8 = arith.constant 0 : index
      %c0_9 = arith.constant 0 : index
      %19 = vector.load %arg8[%c0_8, %c0_9] : memref<8x128xf32, #tpu.memory_space<vmem>>, vector<8x128xf32>
      tpu.vector_store %arg8[%c0_8, %c0_9], %18 {strides = array<i32>} : memref<8x128xf32, #tpu.memory_space<vmem>>, vector<8x128xf32>,
      %cst_10 = arith.constant 0.000000e+00 : f32
      %20 = vector.broadcast %cst_10 : f32 to vector<8x128xf32>
      %c0_11 = arith.constant 0 : index
      %c0_12 = arith.constant 0 : index
      %21 = vector.load %arg9[%c0_11, %c0_12] : memref<8x128xf32, #tpu.memory_space<vmem>>, vector<8x128xf32>
      tpu.vector_store %arg9[%c0_11, %c0_12], %20 {strides = array<i32>} : memref<8x128xf32, #tpu.memory_space<vmem>>, vector<8x128xf32>,
    } else {
    }
    %c1_i32 = arith.constant 1 : i32
    %3 = arith.muli %arg0, %c1_i32 : i32
    %4 = arith.addi %3, %arg1 : i32
    %c1_i32_1 = arith.constant 1 : i32
    %5 = arith.addi %4, %c1_i32_1 : i32
    %c4096_i32 = arith.constant 4096 : i32
    %6 = arith.muli %5, %c4096_i32 : i32
    %c512_i32 = arith.constant 512 : i32
    %7 = arith.cmpi sle, %6, %c512_i32 : i32
    %8 = arith.extui %7 : i1 to i32
    %c0_i32_2 = arith.constant 0 : i32
    %9 = arith.cmpi ne, %8, %c0_i32_2 : i32
    scf.if %9 {
      %c0 = arith.constant 0 : index
      %c0_6 = arith.constant 0 : index
      %16 = vector.load %arg2[%c0, %c0_6] : memref<32x128xbf16, #tpu.memory_space<vmem>>, vector<32x128xbf16>
      %17 = arith.extf %16 : vector<32x128xbf16> to vector<32x128xf32>
      %c0_7 = arith.constant 0 : index
      %c0_8 = arith.constant 0 : index
      %18 = vector.load %arg3[%c0_7, %c0_8] : memref<32x128xi8, #tpu.memory_space<vmem>>, vector<32x128xi8>
      %19 = arith.sitofp %18 : vector<32x128xi8> to vector<32x128xf32>
      %cst = arith.constant 2.000000e+00 : f32
      %20 = vector.broadcast %cst : f32 to vector<32x128xf32>
      %21 = arith.mulf %20, %17 : vector<32x128xf32>
      %cst_9 = arith.constant 1.000000e+00 : f32
      %22 = vector.broadcast %cst_9 : f32 to vector<32x128xf32>
      %23 = arith.subf %21, %22 : vector<32x128xf32>
      %cst_10 = arith.constant 2.000000e+00 : f32
      %24 = vector.broadcast %cst_10 : f32 to vector<32x128xf32>
      %25 = arith.mulf %24, %19 : vector<32x128xf32>
      %cst_11 = arith.constant 1.000000e+00 : f32
      %26 = vector.broadcast %cst_11 : f32 to vector<32x128xf32>
      %27 = arith.subf %26, %25 : vector<32x128xf32>
      %28 = arith.mulf %23, %27 : vector<32x128xf32>
      %cst_12 = arith.constant 0.000000e+00 : f32
      %29 = vector.broadcast %cst_12 : f32 to vector<32x128xf32>
      %30 = arith.maximumf %28, %29 : vector<32x128xf32>
      %31 = math.absf %28 : vector<32x128xf32>
      %cst_13 = arith.constant 0.000000e+00 : f32
      %32 = vector.broadcast %cst_13 : f32 to vector<32x128xf32>
      %33 = arith.subf %32, %31 : vector<32x128xf32>
      %34 = math.exp %33 : vector<32x128xf32>
      %35 = math.log1p %34 : vector<32x128xf32>
      %36 = arith.addf %30, %35 : vector<32x128xf32>
      %c0_14 = arith.constant 0 : index
      %c0_15 = arith.constant 0 : index
      %37 = vector.load %arg7[%c0_14, %c0_15] : memref<8x128xf32, #tpu.memory_space<vmem>>, vector<8x128xf32>
      %38 = vector.shape_cast %36 : vector<32x128xf32> to vector<4x8x128xf32>
      %cst_16 = arith.constant dense<0.000000e+00> : vector<8x128xf32>
      %39 = vector.multi_reduction <add>, %38, %cst_16 [0] : vector<4x8x128xf32> to vector<8x128xf32>
      %40 = arith.addf %37, %39 : vector<8x128xf32>
      %c0_17 = arith.constant 0 : index
      %c0_18 = arith.constant 0 : index
      %41 = vector.load %arg7[%c0_17, %c0_18] : memref<8x128xf32, #tpu.memory_space<vmem>>, vector<8x128xf32>
      tpu.vector_store %arg7[%c0_17, %c0_18], %40 {strides = array<i32>} : memref<8x128xf32, #tpu.memory_space<vmem>>, vector<8x128xf32>,
      %c0_19 = arith.constant 0 : index
      %c0_20 = arith.constant 0 : index
      %42 = vector.load %arg8[%c0_19, %c0_20] : memref<8x128xf32, #tpu.memory_space<vmem>>, vector<8x128xf32>
      %43 = arith.mulf %19, %36 : vector<32x128xf32>
      %44 = vector.shape_cast %43 : vector<32x128xf32> to vector<4x8x128xf32>
      %cst_21 = arith.constant dense<0.000000e+00> : vector<8x128xf32>
      %45 = vector.multi_reduction <add>, %44, %cst_21 [0] : vector<4x8x128xf32> to vector<8x128xf32>
      %46 = arith.addf %42, %45 : vector<8x128xf32>
      %c0_22 = arith.constant 0 : index
      %c0_23 = arith.constant 0 : index
      %47 = vector.load %arg8[%c0_22, %c0_23] : memref<8x128xf32, #tpu.memory_space<vmem>>, vector<8x128xf32>
      tpu.vector_store %arg8[%c0_22, %c0_23], %46 {strides = array<i32>} : memref<8x128xf32, #tpu.memory_space<vmem>>, vector<8x128xf32>,
      %c0_24 = arith.constant 0 : index
      %c0_25 = arith.constant 0 : index
      %48 = vector.load %arg9[%c0_24, %c0_25] : memref<8x128xf32, #tpu.memory_space<vmem>>, vector<8x128xf32>
      %49 = vector.shape_cast %19 : vector<32x128xf32> to vector<4x8x128xf32>
      %cst_26 = arith.constant dense<0.000000e+00> : vector<8x128xf32>
      %50 = vector.multi_reduction <add>, %49, %cst_26 [0] : vector<4x8x128xf32> to vector<8x128xf32>
      %51 = arith.addf %48, %50 : vector<8x128xf32>
      %c0_27 = arith.constant 0 : index
      %c0_28 = arith.constant 0 : index
      %52 = vector.load %arg9[%c0_27, %c0_28] : memref<8x128xf32, #tpu.memory_space<vmem>>, vector<8x128xf32>
      tpu.vector_store %arg9[%c0_27, %c0_28], %51 {strides = array<i32>} : memref<8x128xf32, #tpu.memory_space<vmem>>, vector<8x128xf32>,
    } else {
    }
    %true = arith.constant true
    %10 = arith.xori %7, %true : i1
    %11 = arith.extui %10 : i1 to i32
    %c0_i32_3 = arith.constant 0 : i32
    %12 = arith.cmpi ne, %11, %c0_i32_3 : i32
    scf.if %12 {
      %16 = tpu.iota {dimensions = array<i32: 0>} : vector<32x128xi32>
      %17 = tpu.iota {dimensions = array<i32: 1>} : vector<32x128xi32>
      %c32_i32 = arith.constant 32 : i32
      %18 = arith.muli %4, %c32_i32 : i32
      %19 = vector.broadcast %18 : i32 to vector<32x128xi32>
      %20 = arith.addi %19, %16 : vector<32x128xi32>
      %c128_i32 = arith.constant 128 : i32
      %21 = vector.broadcast %c128_i32 : i32 to vector<32x128xi32>
      %22 = arith.muli %20, %21 : vector<32x128xi32>
      %23 = arith.addi %22, %17 : vector<32x128xi32>
      %c512_i32_6 = arith.constant 512 : i32
      %24 = vector.broadcast %c512_i32_6 : i32 to vector<32x128xi32>
      %25 = arith.cmpi slt, %23, %24 : vector<32x128xi32>
      %c0 = arith.constant 0 : index
      %c0_7 = arith.constant 0 : index
      %26 = vector.load %arg2[%c0, %c0_7] : memref<32x128xbf16, #tpu.memory_space<vmem>>, vector<32x128xbf16>
      %27 = arith.extf %26 : vector<32x128xbf16> to vector<32x128xf32>
      %cst = arith.constant 0.000000e+00 : f32
      %28 = vector.broadcast %cst : f32 to vector<32x128xf32>
      %29 = arith.select %25, %27, %28 : vector<32x128xi1>, vector<32x128xf32>
      %c0_8 = arith.constant 0 : index
      %c0_9 = arith.constant 0 : index
      %30 = vector.load %arg3[%c0_8, %c0_9] : memref<32x128xi8, #tpu.memory_space<vmem>>, vector<32x128xi8>
      %31 = arith.sitofp %30 : vector<32x128xi8> to vector<32x128xf32>
      %cst_10 = arith.constant 0.000000e+00 : f32
      %32 = vector.broadcast %cst_10 : f32 to vector<32x128xf32>
      %33 = arith.select %25, %31, %32 : vector<32x128xi1>, vector<32x128xf32>
      %cst_11 = arith.constant 2.000000e+00 : f32
      %34 = vector.broadcast %cst_11 : f32 to vector<32x128xf32>
      %35 = arith.mulf %34, %29 : vector<32x128xf32>
      %cst_12 = arith.constant 1.000000e+00 : f32
      %36 = vector.broadcast %cst_12 : f32 to vector<32x128xf32>
      %37 = arith.subf %35, %36 : vector<32x128xf32>
      %cst_13 = arith.constant 2.000000e+00 : f32
      %38 = vector.broadcast %cst_13 : f32 to vector<32x128xf32>
      %39 = arith.mulf %38, %33 : vector<32x128xf32>
      %cst_14 = arith.constant 1.000000e+00 : f32
      %40 = vector.broadcast %cst_14 : f32 to vector<32x128xf32>
      %41 = arith.subf %40, %39 : vector<32x128xf32>
      %42 = arith.mulf %37, %41 : vector<32x128xf32>
      %cst_15 = arith.constant 0.000000e+00 : f32
      %43 = vector.broadcast %cst_15 : f32 to vector<32x128xf32>
      %44 = arith.maximumf %42, %43 : vector<32x128xf32>
      %45 = math.absf %42 : vector<32x128xf32>
      %cst_16 = arith.constant 0.000000e+00 : f32
      %46 = vector.broadcast %cst_16 : f32 to vector<32x128xf32>
      %47 = arith.subf %46, %45 : vector<32x128xf32>
      %48 = math.exp %47 : vector<32x128xf32>
      %49 = math.log1p %48 : vector<32x128xf32>
      %50 = arith.addf %44, %49 : vector<32x128xf32>
      %cst_17 = arith.constant 0.000000e+00 : f32
      %51 = vector.broadcast %cst_17 : f32 to vector<32x128xf32>
      %52 = arith.select %25, %50, %51 : vector<32x128xi1>, vector<32x128xf32>
      %c0_18 = arith.constant 0 : index
      %c0_19 = arith.constant 0 : index
      %53 = vector.load %arg7[%c0_18, %c0_19] : memref<8x128xf32, #tpu.memory_space<vmem>>, vector<8x128xf32>
      %54 = vector.shape_cast %52 : vector<32x128xf32> to vector<4x8x128xf32>
      %cst_20 = arith.constant dense<0.000000e+00> : vector<8x128xf32>
      %55 = vector.multi_reduction <add>, %54, %cst_20 [0] : vector<4x8x128xf32> to vector<8x128xf32>
      %56 = arith.addf %53, %55 : vector<8x128xf32>
      %c0_21 = arith.constant 0 : index
      %c0_22 = arith.constant 0 : index
      %57 = vector.load %arg7[%c0_21, %c0_22] : memref<8x128xf32, #tpu.memory_space<vmem>>, vector<8x128xf32>
      tpu.vector_store %arg7[%c0_21, %c0_22], %56 {strides = array<i32>} : memref<8x128xf32, #tpu.memory_space<vmem>>, vector<8x128xf32>,
      %c0_23 = arith.constant 0 : index
      %c0_24 = arith.constant 0 : index
      %58 = vector.load %arg8[%c0_23, %c0_24] : memref<8x128xf32, #tpu.memory_space<vmem>>, vector<8x128xf32>
      %59 = arith.mulf %33, %52 : vector<32x128xf32>
      %60 = vector.shape_cast %59 : vector<32x128xf32> to vector<4x8x128xf32>
      %cst_25 = arith.constant dense<0.000000e+00> : vector<8x128xf32>
      %61 = vector.multi_reduction <add>, %60, %cst_25 [0] : vector<4x8x128xf32> to vector<8x128xf32>
      %62 = arith.addf %58, %61 : vector<8x128xf32>
      %c0_26 = arith.constant 0 : index
      %c0_27 = arith.constant 0 : index
      %63 = vector.load %arg8[%c0_26, %c0_27] : memref<8x128xf32, #tpu.memory_space<vmem>>, vector<8x128xf32>
      tpu.vector_store %arg8[%c0_26, %c0_27], %62 {strides = array<i32>} : memref<8x128xf32, #tpu.memory_space<vmem>>, vector<8x128xf32>,
      %c0_28 = arith.constant 0 : index
      %c0_29 = arith.constant 0 : index
      %64 = vector.load %arg9[%c0_28, %c0_29] : memref<8x128xf32, #tpu.memory_space<vmem>>, vector<8x128xf32>
      %65 = vector.shape_cast %33 : vector<32x128xf32> to vector<4x8x128xf32>
      %cst_30 = arith.constant dense<0.000000e+00> : vector<8x128xf32>
      %66 = vector.multi_reduction <add>, %65, %cst_30 [0] : vector<4x8x128xf32> to vector<8x128xf32>
      %67 = arith.addf %64, %66 : vector<8x128xf32>
      %c0_31 = arith.constant 0 : index
      %c0_32 = arith.constant 0 : index
      %68 = vector.load %arg9[%c0_31, %c0_32] : memref<8x128xf32, #tpu.memory_space<vmem>>, vector<8x128xf32>
      tpu.vector_store %arg9[%c0_31, %c0_32], %67 {strides = array<i32>} : memref<8x128xf32, #tpu.memory_space<vmem>>, vector<8x128xf32>,
    } else {
    }
    %c0_i32_4 = arith.constant 0 : i32
    %13 = arith.cmpi eq, %arg1, %c0_i32_4 : i32
    %14 = arith.extui %13 : i1 to i32
    %c0_i32_5 = arith.constant 0 : i32
    %15 = arith.cmpi ne, %14, %c0_i32_5 : i32
    scf.if %15 {
      %c0 = arith.constant 0 : index
      %c0_6 = arith.constant 0 : index
      %16 = vector.load %arg7[%c0, %c0_6] : memref<8x128xf32, #tpu.memory_space<vmem>>, vector<8x128xf32>
      %cst = arith.constant dense<0.000000e+00> : vector<128xf32>
      %17 = vector.multi_reduction <add>, %16, %cst [0] : vector<8x128xf32> to vector<128xf32>
      %18 = vector.shape_cast %17 : vector<128xf32> to vector<1x128xf32>
      %c0_7 = arith.constant 0 : index
      %c0_8 = arith.constant 0 : index
      %c0_9 = arith.constant 0 : index
      %19 = vector.load %arg4[%c0_7, %c0_8, %c0_9] : memref<1x1x128xf32, #tpu.memory_space<vmem>>, vector<1x1x128xf32>
      %20 = vector.shape_cast %19 : vector<1x1x128xf32> to vector<1x128xf32>
      %21 = vector.shape_cast %18 : vector<1x128xf32> to vector<1x1x128xf32>
      tpu.vector_store %arg4[%c0_7, %c0_8, %c0_9], %21 {strides = array<i32>} : memref<1x1x128xf32, #tpu.memory_space<vmem>>, vector<1x1x128xf32>,
      %c0_10 = arith.constant 0 : index
      %c0_11 = arith.constant 0 : index
      %22 = vector.load %arg8[%c0_10, %c0_11] : memref<8x128xf32, #tpu.memory_space<vmem>>, vector<8x128xf32>
      %cst_12 = arith.constant dense<0.000000e+00> : vector<128xf32>
      %23 = vector.multi_reduction <add>, %22, %cst_12 [0] : vector<8x128xf32> to vector<128xf32>
      %24 = vector.shape_cast %23 : vector<128xf32> to vector<1x128xf32>
      %c0_13 = arith.constant 0 : index
      %c0_14 = arith.constant 0 : index
      %c0_15 = arith.constant 0 : index
      %25 = vector.load %arg5[%c0_13, %c0_14, %c0_15] : memref<1x1x128xf32, #tpu.memory_space<vmem>>, vector<1x1x128xf32>
      %26 = vector.shape_cast %25 : vector<1x1x128xf32> to vector<1x128xf32>
      %27 = vector.shape_cast %24 : vector<1x128xf32> to vector<1x1x128xf32>
      tpu.vector_store %arg5[%c0_13, %c0_14, %c0_15], %27 {strides = array<i32>} : memref<1x1x128xf32, #tpu.memory_space<vmem>>, vector<1x1x128xf32>,
      %c0_16 = arith.constant 0 : index
      %c0_17 = arith.constant 0 : index
      %28 = vector.load %arg9[%c0_16, %c0_17] : memref<8x128xf32, #tpu.memory_space<vmem>>, vector<8x128xf32>
      %cst_18 = arith.constant dense<0.000000e+00> : vector<128xf32>
      %29 = vector.multi_reduction <add>, %28, %cst_18 [0] : vector<8x128xf32> to vector<128xf32>
      %30 = vector.shape_cast %29 : vector<128xf32> to vector<1x128xf32>
      %c0_19 = arith.constant 0 : index
      %c0_20 = arith.constant 0 : index
      %c0_21 = arith.constant 0 : index
      %31 = vector.load %arg6[%c0_19, %c0_20, %c0_21] : memref<1x1x128xf32, #tpu.memory_space<vmem>>, vector<1x1x128xf32>
      %32 = vector.shape_cast %31 : vector<1x1x128xf32> to vector<1x128xf32>
      %33 = vector.shape_cast %30 : vector<1x128xf32> to vector<1x1x128xf32>
      tpu.vector_store %arg6[%c0_19, %c0_20, %c0_21], %33 {strides = array<i32>} : memref<1x1x128xf32, #tpu.memory_space<vmem>>, vector<1x1x128xf32>,
    } else {
    }
    return
  }
  func.func @transform_0(%arg0: i32, %arg1: i32) -> (i32, i32) {
    %c1_i32 = arith.constant 1 : i32
    %0 = arith.muli %arg0, %c1_i32 : i32
    %1 = arith.addi %0, %arg1 : i32
    %c0_i32 = arith.constant 0 : i32
    %2 = arith.minsi %1, %c0_i32 : i32
    %c0_i32_0 = arith.constant 0 : i32
    %c0_i32_1 = arith.constant 0 : i32
    return %2, %c0_i32_0 : i32, i32
  }
  func.func @transform_1(%arg0: i32, %arg1: i32) -> (i32, i32) {
    %c1_i32 = arith.constant 1 : i32
    %0 = arith.muli %arg0, %c1_i32 : i32
    %1 = arith.addi %0, %arg1 : i32
    %c0_i32 = arith.constant 0 : i32
    %2 = arith.minsi %1, %c0_i32 : i32
    %c0_i32_0 = arith.constant 0 : i32
    %c0_i32_1 = arith.constant 0 : i32
    return %2, %c0_i32_0 : i32, i32
  }
  func.func @transform_2(%arg0: i32, %arg1: i32) -> (i32, i32, i32) {
    %c0_i32 = arith.constant 0 : i32
    %c0_i32_0 = arith.constant 0 : i32
    %c0_i32_1 = arith.constant 0 : i32
    return %arg0, %c0_i32, %c0_i32_0 : i32, i32, i32
  }
  func.func @transform_3(%arg0: i32, %arg1: i32) -> (i32, i32, i32) {
    %c0_i32 = arith.constant 0 : i32
    %c0_i32_0 = arith.constant 0 : i32
    %c0_i32_1 = arith.constant 0 : i32
    return %arg0, %c0_i32, %c0_i32_0 : i32, i32, i32
  }
  func.func @transform_4(%arg0: i32, %arg1: i32) -> (i32, i32, i32) {
    %c0_i32 = arith.constant 0 : i32
    %c0_i32_0 = arith.constant 0 : i32
    %c0_i32_1 = arith.constant 0 : i32
    return %arg0, %c0_i32, %c0_i32_0 : i32, i32, i32
  }
}

</mosaic_0001>

<llo_original>
// kernel: tpu_custom_call.1
$region0: #{tpu_custom_call.1}
  #allocation0 [shape = 'u32[]', space=smem, size = 0x4, offset = 0x4, fixed_abs, tag = 'smem constant byte address 0x4 - core index']
  #allocation1 [shape = 'u32[144,128]{1,0:T(1,128)}', space=vmem, size = 0x12000, scoped, tag = 'internal scratch']
  #allocation2 [shape = 'f32[8,128]{1,0:T(8,128)}', space=vmem, size = 0x1000, scoped, tag = 'scratch operand']
  #allocation3 [shape = 'f32[8,128]{1,0:T(8,128)}', space=vmem, size = 0x1000, scoped, tag = 'scratch operand']
  #allocation4 [shape = 'f32[8,128]{1,0:T(8,128)}', space=vmem, size = 0x1000, scoped, tag = 'scratch operand']
  %s0 = inlined_call_operand.hbm [shape: bf16[4,128], index: 0, kind: input, shape index: {}]
  %s1 = inlined_call_operand.vmem [shape: s8[4,128], index: 1, kind: input, shape index: {}]
  %s2 = inlined_call_operand.hbm [shape: f32[1,1,128], index: 2, kind: output, shape index: {0}]
  %s3 = inlined_call_operand.hbm [shape: f32[1,1,128], index: 3, kind: output, shape index: {1}]
  %s4 = inlined_call_operand.hbm [shape: f32[1,1,128], index: 4, kind: output, shape index: {2}]
  %5 = xla_tuple %s2, %s3, %s4
  %s6 = sld [smem:[#allocation0]]
  $region54: #{tpu_custom_call.1} parent=0
    _
  %s8 = ssub.s32 1, %s6
  %s9 = scalar_select 0, %s8, %s6
  $region1: #{tpu_custom_call.1} parent=0
    #allocation5 [shape = 'u8[8192]{0}', space=vmem, size = 0x2000, scoped, tag = 'input window, operand 0, single buffered']
    #allocation6 [shape = 's32[1]{0}', space=sflag, size = 0x4, scoped, tag = 'scoped memory for tpu_custom_call.1']
    #allocation7 [shape = 's32[1]{0}', space=sflag, size = 0x4, scoped, tag = 'scoped memory for tpu_custom_call.1']
    #allocation8 [shape = 'u8[512]{0}', space=vmem, size = 0x400, scoped, tag = 'output window, operand 0, single buffered']
    #allocation9 [shape = 'u8[512]{0}', space=vmem, size = 0x400, scoped, tag = 'output window, operand 1, single buffered']
    #allocation10 [shape = 's32[1]{0}', space=sflag, size = 0x4, scoped, tag = 'scoped memory for tpu_custom_call.1']
    #allocation11 [shape = 'u8[512]{0}', space=vmem, size = 0x400, scoped, tag = 'output window, operand 2, single buffered']
    %10 = vsyncpa [#allocation6], 0
    %11 = vsyncpa [#allocation7], 0
    %12 = vsyncpa [#allocation10], 0
    // Predicated region
    $region2: #{tpu_custom_call.1} parent=1 // pred_check
      _
    $region3: #{tpu_custom_call.1} parent=1 // pred_check_branch
      %14 = sbr.rel (0) target = $region5
    $region4: #{tpu_custom_call.1} parent=1 // pred_region
      %s15 = sadd.s32 0, 0
      %p16 = scmp.lt.s32.totalorder %s15, 0
      %s17 = scalar_select %p16, %s15, 0
      %s18 = smul.u32 8, %s17
      %s19 = ssub.s32 1, %s18
      %s20 = smul.u32 32, %s19
      %s22 = ssub.s32 256, %s20
      %23 = vsyncadd [#allocation6], %s22
      %p24 = scmp.ne.s32.totalorder 0, %s20
      %s25 = smul.addr %s18, 32
      %s26 = scalar_lea.hbm %s0, %s25
      %s27 = smul.u32 2, %s19
      %s28 = sshll.u32 [#allocation5], 4
      %s29 = int_to_ptr.vmem [resolvable:$true] %s28
      %s30 = sshll.u32 %s27, 4
      %34 = dma.hbm_to_vmem [thread:$0]  (%p24), %s26, %s30, %s29, [#allocation6], 32, 32, 2
    $region5: #{tpu_custom_call.1} parent=1 // pred_fallthru
      _
    // Predicated region
    $region6: #{tpu_custom_call.1} parent=1 // pred_check
      _
    $region7: #{tpu_custom_call.1} parent=1 // pred_check_branch
      %36 = sbr.rel (0) target = $region9
    $region8: #{tpu_custom_call.1} parent=1 // pred_region
      %s37 = sadd.s32 0, 0
      %p38 = scmp.lt.s32.totalorder %s37, 0
      %s39 = scalar_select %p38, %s37, 0
      %s40 = smul.u32 8, %s39
      %s41 = ssub.s32 1, %s40
      %s42 = smul.u32 16, %s41
      %p43 = scmp.lt.s32.totalorder %s40, 0
      %s44 = scalar_select %p43, %s40, 0
      %s45 = scalar_lea.vmem %s1, %s44
      %s46 = sadd.s32 0, 0
      %p47 = scmp.lt.s32.totalorder %s46, 0
      %s48 = scalar_select %p47, %s46, 0
      %s49 = smul.u32 8, %s48
      %s50 = ssub.s32 1, %s49
      %s51 = smul.u32 16, %s50
    $region9: #{tpu_custom_call.1} parent=1 // pred_fallthru
      _
    // Predicated region
    $region10: #{tpu_custom_call.1} parent=1 // pred_check
      _
    $region11: #{tpu_custom_call.1} parent=1 // pred_check_branch
      %53 = sbr.rel (0) target = $region13
    $region12: #{tpu_custom_call.1} parent=1 // pred_region
      %54 = dma.done [#allocation6], 256
    $region13: #{tpu_custom_call.1} parent=1 // pred_fallthru
      _
    %s55 = sadd.s32 0, 0
    %p56 = scmp.lt.s32.totalorder %s55, 0
    %s57 = scalar_select %p56, %s55, 0
    %s58 = smul.u32 8, %s57
    %s59 = ssub.s32 1, %s58
    %s60 = smul.u32 16, %s59
    %p61 = scmp.lt.s32.totalorder %s58, 0
    %s62 = scalar_select %p61, %s58, 0
    %s63 = scalar_lea.vmem %s1, %s62
    %s64 = sadd.s32 0, 0
    %p65 = scmp.lt.s32.totalorder %s64, 0
    %s66 = scalar_select %p65, %s64, 0
    %s67 = smul.u32 8, %s66
    %s68 = ssub.s32 1, %s67
    %s69 = smul.u32 32, %s68
    %s70 = sadd.s32 0, 0
    %p71 = scmp.lt.s32.totalorder %s70, 0
    %s72 = scalar_select %p71, %s70, 0
    %s73 = smul.u32 8, %s72
    %s74 = ssub.s32 1, %s73
    %s75 = smul.u32 16, %s74
    %p76 = scmp.lt.s32.totalorder %s73, 0
    %s77 = scalar_select %p76, %s73, 0
    %s78 = scalar_lea.vmem %s1, %s77
    %s79 = sadd.s32 0, 0
    %p80 = scmp.lt.s32.totalorder %s79, 0
    %s81 = scalar_select %p80, %s79, 0
    %s82 = smul.u32 8, %s81
    %s83 = ssub.s32 1, %s82
    %s84 = smul.u32 16, %s83
    %p85 = scmp.eq.s32.totalorder 0, 0
    // Predicated region
    $region14: #{tpu_custom_call.1} parent=1 // pred_check
      %p86 = pneg %p85
    $region15: #{tpu_custom_call.1} parent=1 // pred_check_branch
      %88 = sbr.rel (%p86) target = $region17
    $region16: #{tpu_custom_call.1} parent=1 // pred_region
      %89 = vst [vmem:[#allocation2] sm:$0xff] 0.0
      %90 = vst [vmem:[#allocation3] sm:$0xff] 0.0
      %91 = vst [vmem:[#allocation4] sm:$0xff] 0.0
    $region17: #{tpu_custom_call.1} parent=1 // pred_fallthru
      _
    %s92 = sadd.s32 0, 0
    %s93 = sadd.s32 %s92, 1
    %s94 = smul.u32 %s93, 4096
    %p95 = scmp.le.s32.totalorder %s94, 512
    // Predicated region
    $region18: #{tpu_custom_call.1} parent=1 // pred_check
      %p96 = pneg %p95
    $region19: #{tpu_custom_call.1} parent=1 // pred_check_branch
      %98 = sbr.rel (%p96) target = $region21
    $region20: #{tpu_custom_call.1} parent=1 // pred_region
      %v99 = vld [vmem:[#allocation5] sm:$0x3]
      %v100 = vld [vmem:[#allocation5 + $0x2] sm:$0x3]
      %v101 = vld [vmem:[#allocation5 + $0x4] sm:$0x3]
      %v102 = vld [vmem:[#allocation5 + $0x6] sm:$0x3]
      %v103 = vld [vmem:[#allocation5 + $0x8] sm:$0x3]
      %v104 = vld [vmem:[#allocation5 + $0xa] sm:$0x3]
      %v105 = vld [vmem:[#allocation5 + $0xc] sm:$0x3]
      %v106 = vld [vmem:[#allocation5 + $0xe] sm:$0x3]
      %v107 = vunpack.c.l.bf16 %v99
      %v108 = vunpack.c.l.bf16 %v100
      %v109 = vunpack.c.l.bf16 %v101
      %v110 = vunpack.c.l.bf16 %v102
      %v111 = vunpack.c.l.bf16 %v103
      %v112 = vunpack.c.l.bf16 %v104
      %v113 = vunpack.c.l.bf16 %v105
      %v114 = vunpack.c.l.bf16 %v106
      %v115 = vld [vmem:[%s78] sm:$0x1]
      %v116 = vld [vmem:[%s78 + $0x1] sm:$0x1]
      %v117 = vld [vmem:[%s78 + $0x2] sm:$0x1]
      %v118 = vld [vmem:[%s78 + $0x3] sm:$0x1]
      %v119 = vld [vmem:[%s78 + $0x4] sm:$0x1]
      %v120 = vld [vmem:[%s78 + $0x5] sm:$0x1]
      %v121 = vld [vmem:[%s78 + $0x6] sm:$0x1]
      %v122 = vld [vmem:[%s78 + $0x7] sm:$0x1]
      %v123 = vunpack.c.0.s8 %v115
      %v124 = vunpack.c.0.s8 %v116
      %v125 = vunpack.c.0.s8 %v117
      %v126 = vunpack.c.0.s8 %v118
      %v127 = vunpack.c.0.s8 %v119
      %v128 = vunpack.c.0.s8 %v120
      %v129 = vunpack.c.0.s8 %v121
      %v130 = vunpack.c.0.s8 %v122
      %v131 = vcvt.s32.f32 %v123
      %v132 = vcvt.s32.f32 %v124
      %v133 = vcvt.s32.f32 %v125
      %v134 = vcvt.s32.f32 %v126
      %v135 = vcvt.s32.f32 %v127
      %v136 = vcvt.s32.f32 %v128
      %v137 = vcvt.s32.f32 %v129
      %v138 = vcvt.s32.f32 %v130
      %v139 = vmul.f32 %v107, 2.0
      %v140 = vmul.f32 %v108, 2.0
      %v141 = vmul.f32 %v109, 2.0
      %v142 = vmul.f32 %v110, 2.0
      %v143 = vmul.f32 %v111, 2.0
      %v144 = vmul.f32 %v112, 2.0
      %v145 = vmul.f32 %v113, 2.0
      %v146 = vmul.f32 %v114, 2.0
      %v147 = vsub.f32 %v139, 1.0
      %v148 = vsub.f32 %v140, 1.0
      %v149 = vsub.f32 %v141, 1.0
      %v150 = vsub.f32 %v142, 1.0
      %v151 = vsub.f32 %v143, 1.0
      %v152 = vsub.f32 %v144, 1.0
      %v153 = vsub.f32 %v145, 1.0
      %v154 = vsub.f32 %v146, 1.0
      %v155 = vmul.f32 %v131, 2.0
      %v156 = vmul.f32 %v132, 2.0
      %v157 = vmul.f32 %v133, 2.0
      %v158 = vmul.f32 %v134, 2.0
      %v159 = vmul.f32 %v135, 2.0
      %v160 = vmul.f32 %v136, 2.0
      %v161 = vmul.f32 %v137, 2.0
      %v162 = vmul.f32 %v138, 2.0
      %v163 = vsub.f32 1.0, %v155
      %v164 = vsub.f32 1.0, %v156
      %v165 = vsub.f32 1.0, %v157
      %v166 = vsub.f32 1.0, %v158
      %v167 = vsub.f32 1.0, %v159
      %v168 = vsub.f32 1.0, %v160
      %v169 = vsub.f32 1.0, %v161
      %v170 = vsub.f32 1.0, %v162
      %v171 = vmul.f32 %v147, %v163
      %v172 = vmul.f32 %v148, %v164
      %v173 = vmul.f32 %v149, %v165
      %v174 = vmul.f32 %v150, %v166
      %v175 = vmul.f32 %v151, %v167
      %v176 = vmul.f32 %v152, %v168
      %v177 = vmul.f32 %v153, %v169
      %v178 = vmul.f32 %v154, %v170
      %v179 = vmax.f32 %v171, 0.0
      %v180 = vmax.f32 %v172, 0.0
      %v181 = vmax.f32 %v173, 0.0
      %v182 = vmax.f32 %v174, 0.0
      %v183 = vmax.f32 %v175, 0.0
      %v184 = vmax.f32 %v176, 0.0
      %v185 = vmax.f32 %v177, 0.0
      %v186 = vmax.f32 %v178, 0.0
      %v187 = vand.u32 2147483647, %v171
      %v188 = vand.u32 2147483647, %v172
      %v189 = vand.u32 2147483647, %v173
      %v190 = vand.u32 2147483647, %v174
      %v191 = vand.u32 2147483647, %v175
      %v192 = vand.u32 2147483647, %v176
      %v193 = vand.u32 2147483647, %v177
      %v194 = vand.u32 2147483647, %v178
      %v195 = vsub.f32 0.0, %v187
      %v196 = vsub.f32 0.0, %v188
      %v197 = vsub.f32 0.0, %v189
      %v198 = vsub.f32 0.0, %v190
      %v199 = vsub.f32 0.0, %v191
      %v200 = vsub.f32 0.0, %v192
      %v201 = vsub.f32 0.0, %v193
      %v202 = vsub.f32 0.0, %v194
      %v203 = vmul.f32 %v195, 1.442695
      %v204 = vpow.pop %v203
      %v205 = vmul.f32 %v196, 1.442695
      %v206 = vpow.pop %v205
      %v207 = vmul.f32 %v197, 1.442695
      %v208 = vpow.pop %v207
      %v209 = vmul.f32 %v198, 1.442695
      %v210 = vpow.pop %v209
      %v211 = vmul.f32 %v199, 1.442695
      %v212 = vpow.pop %v211
      %v213 = vmul.f32 %v200, 1.442695
      %v214 = vpow.pop %v213
      %v215 = vmul.f32 %v201, 1.442695
      %v216 = vpow.pop %v215
      %v217 = vmul.f32 %v202, 1.442695
      %v218 = vpow.pop %v217
      %v219 = vadd.f32 %v204, 1.0
      %v220 = vlog2.pop %v219
      %v221 = vmul.f32 %v220, 0.6931472
      %v222 = vmul.f32 -0.5, %v204
      %v223 = vadd.f32 %v222, 1.0
      %v224 = vmul.f32 %v223, %v204
      %v225 = vand.u32 2147483647, %v204
      %vm226 = vcmp.lt.f32.partialorder %v225, 0.0004427343
      %v227 = vsel %vm226, %v224, %v221
      %v228 = vadd.f32 %v206, 1.0
      %v229 = vlog2.pop %v228
      %v230 = vmul.f32 %v229, 0.6931472
      %v231 = vmul.f32 -0.5, %v206
      %v232 = vadd.f32 %v231, 1.0
      %v233 = vmul.f32 %v232, %v206
      %v234 = vand.u32 2147483647, %v206
      %vm235 = vcmp.lt.f32.partialorder %v234, 0.0004427343
      %v236 = vsel %vm235, %v233, %v230
      %v237 = vadd.f32 %v208, 1.0
      %v238 = vlog2.pop %v237
      %v239 = vmul.f32 %v238, 0.6931472
      %v240 = vmul.f32 -0.5, %v208
      %v241 = vadd.f32 %v240, 1.0
      %v242 = vmul.f32 %v241, %v208
      %v243 = vand.u32 2147483647, %v208
      %vm244 = vcmp.lt.f32.partialorder %v243, 0.0004427343
      %v245 = vsel %vm244, %v242, %v239
      %v246 = vadd.f32 %v210, 1.0
      %v247 = vlog2.pop %v246
      %v248 = vmul.f32 %v247, 0.6931472
      %v249 = vmul.f32 -0.5, %v210
      %v250 = vadd.f32 %v249, 1.0
      %v251 = vmul.f32 %v250, %v210
      %v252 = vand.u32 2147483647, %v210
      %vm253 = vcmp.lt.f32.partialorder %v252, 0.0004427343
      %v254 = vsel %vm253, %v251, %v248
      %v255 = vadd.f32 %v212, 1.0
      %v256 = vlog2.pop %v255
      %v257 = vmul.f32 %v256, 0.6931472
      %v258 = vmul.f32 -0.5, %v212
      %v259 = vadd.f32 %v258, 1.0
      %v260 = vmul.f32 %v259, %v212
      %v261 = vand.u32 2147483647, %v212
      %vm262 = vcmp.lt.f32.partialorder %v261, 0.0004427343
      %v263 = vsel %vm262, %v260, %v257
      %v264 = vadd.f32 %v214, 1.0
      %v265 = vlog2.pop %v264
      %v266 = vmul.f32 %v265, 0.6931472
      %v267 = vmul.f32 -0.5, %v214
      %v268 = vadd.f32 %v267, 1.0
      %v269 = vmul.f32 %v268, %v214
      %v270 = vand.u32 2147483647, %v214
      %vm271 = vcmp.lt.f32.partialorder %v270, 0.0004427343
      %v272 = vsel %vm271, %v269, %v266
      %v273 = vadd.f32 %v216, 1.0
      %v274 = vlog2.pop %v273
      %v275 = vmul.f32 %v274, 0.6931472
      %v276 = vmul.f32 -0.5, %v216
      %v277 = vadd.f32 %v276, 1.0
      %v278 = vmul.f32 %v277, %v216
      %v279 = vand.u32 2147483647, %v216
      %vm280 = vcmp.lt.f32.partialorder %v279, 0.0004427343
      %v281 = vsel %vm280, %v278, %v275
      %v282 = vadd.f32 %v218, 1.0
      %v283 = vlog2.pop %v282
      %v284 = vmul.f32 %v283, 0.6931472
      %v285 = vmul.f32 -0.5, %v218
      %v286 = vadd.f32 %v285, 1.0
      %v287 = vmul.f32 %v286, %v218
      %v288 = vand.u32 2147483647, %v218
      %vm289 = vcmp.lt.f32.partialorder %v288, 0.0004427343
      %v290 = vsel %vm289, %v287, %v284
      %v291 = vadd.f32 %v179, %v227
      %v292 = vadd.f32 %v180, %v236
      %v293 = vadd.f32 %v181, %v245
      %v294 = vadd.f32 %v182, %v254
      %v295 = vadd.f32 %v183, %v263
      %v296 = vadd.f32 %v184, %v272
      %v297 = vadd.f32 %v185, %v281
      %v298 = vadd.f32 %v186, %v290
      %v299 = vld [vmem:[#allocation2] sm:$0xff]
      %v308 = vcombine.low %v291, %v292
      %v309 = vcombine.low %v293, %v294
      %v310 = vcombine.low %v295, %v296
      %v311 = vcombine.low %v297, %v298
      %v316 = vadd.f32 %v308, %v309
      %v317 = vadd.f32 %v316, %v310
      %v318 = vadd.f32 %v317, %v311
      %v319 = vadd.f32 %v299, %v318
      %320 = vst [vmem:[#allocation2] sm:$0xff] %v319
      %v321 = vld [vmem:[#allocation3] sm:$0xff]
      %v322 = vmul.f32 %v131, %v291
      %v323 = vmul.f32 %v132, %v292
      %v324 = vmul.f32 %v133, %v293
      %v325 = vmul.f32 %v134, %v294
      %v326 = vmul.f32 %v135, %v295
      %v327 = vmul.f32 %v136, %v296
      %v328 = vmul.f32 %v137, %v297
      %v329 = vmul.f32 %v138, %v298
      %v338 = vcombine.low %v322, %v323
      %v339 = vcombine.low %v324, %v325
      %v340 = vcombine.low %v326, %v327
      %v341 = vcombine.low %v328, %v329
      %v346 = vadd.f32 %v338, %v339
      %v347 = vadd.f32 %v346, %v340
      %v348 = vadd.f32 %v347, %v341
      %v349 = vadd.f32 %v321, %v348
      %350 = vst [vmem:[#allocation3] sm:$0xff] %v349
      %v351 = vld [vmem:[#allocation4] sm:$0xff]
      %v360 = vcombine.low %v131, %v132
      %v361 = vcombine.low %v133, %v134
      %v362 = vcombine.low %v135, %v136
      %v363 = vcombine.low %v137, %v138
      %v368 = vadd.f32 %v360, %v361
      %v369 = vadd.f32 %v368, %v362
      %v370 = vadd.f32 %v369, %v363
      %v371 = vadd.f32 %v351, %v370
      %372 = vst [vmem:[#allocation4] sm:$0xff] %v371
    $region21: #{tpu_custom_call.1} parent=1 // pred_fallthru
      _
    %p373 = scmp.gt.s32.totalorder %s94, 512
    // Predicated region
    $region22: #{tpu_custom_call.1} parent=1 // pred_check
      %p374 = pneg %p373
    $region23: #{tpu_custom_call.1} parent=1 // pred_check_branch
      %376 = sbr.rel (%p374) target = $region25
    $region24: #{tpu_custom_call.1} parent=1 // pred_region
      %v377 = vlaneseq
      %v378 = vshrl.u32 %v377, 7
      %v379 = vadd.s32 %v378, 8
      %v380 = vadd.s32 %v378, 16
      %v381 = vadd.s32 %v378, 24
      %v382 = vlaneseq
      %v383 = vand.u32 %v382, 127
      %s384 = smul.u32 %s92, 32
      %v385 = vstv %s384
      %v386 = vadd.s32 %v385, %v378
      %v387 = vadd.s32 %v385, %v379
      %v388 = vadd.s32 %v385, %v380
      %v389 = vadd.s32 %v385, %v381
      %v390 = vmul.u32 %v386, 128
      %v391 = vmul.u32 %v387, 128
      %v392 = vmul.u32 %v388, 128
      %v393 = vmul.u32 %v389, 128
      %v394 = vadd.s32 %v390, %v383
      %v395 = vadd.s32 %v391, %v383
      %v396 = vadd.s32 %v392, %v383
      %v397 = vadd.s32 %v393, %v383
      %vm398 = vcmp.lt.s32.totalorder %v394, 512
      %vm399 = vcmp.lt.s32.totalorder %v395, 512
      %vm400 = vcmp.lt.s32.totalorder %v396, 512
      %vm401 = vcmp.lt.s32.totalorder %v397, 512
      %v402 = vld [vmem:[#allocation5] sm:$0x3]
      %v403 = vld [vmem:[#allocation5 + $0x2] sm:$0x3]
      %v404 = vld [vmem:[#allocation5 + $0x4] sm:$0x3]
      %v405 = vld [vmem:[#allocation5 + $0x6] sm:$0x3]
      %v406 = vld [vmem:[#allocation5 + $0x8] sm:$0x3]
      %v407 = vld [vmem:[#allocation5 + $0xa] sm:$0x3]
      %v408 = vld [vmem:[#allocation5 + $0xc] sm:$0x3]
      %v409 = vld [vmem:[#allocation5 + $0xe] sm:$0x3]
      %v410 = vunpack.c.l.bf16 %v402
      %v411 = vunpack.c.l.bf16 %v403
      %v412 = vunpack.c.l.bf16 %v404
      %v413 = vunpack.c.l.bf16 %v405
      %v414 = vunpack.c.l.bf16 %v406
      %v415 = vunpack.c.l.bf16 %v407
      %v416 = vunpack.c.l.bf16 %v408
      %v417 = vunpack.c.l.bf16 %v409
      %v426 = vcombine.low %v410, %v411
      %v427 = vcombine.low %v412, %v413
      %v428 = vcombine.low %v414, %v415
      %v429 = vcombine.low %v416, %v417
      %v434 = vsel %vm398, %v426, 0.0
      %v435 = vsel %vm399, %v427, 0.0
      %v436 = vsel %vm400, %v428, 0.0
      %v437 = vsel %vm401, %v429, 0.0
      %v438 = vld [vmem:[%s78] sm:$0x1]
      %v439 = vld [vmem:[%s78 + $0x1] sm:$0x1]
      %v440 = vld [vmem:[%s78 + $0x2] sm:$0x1]
      %v441 = vld [vmem:[%s78 + $0x3] sm:$0x1]
      %v442 = vld [vmem:[%s78 + $0x4] sm:$0x1]
      %v443 = vld [vmem:[%s78 + $0x5] sm:$0x1]
      %v444 = vld [vmem:[%s78 + $0x6] sm:$0x1]
      %v445 = vld [vmem:[%s78 + $0x7] sm:$0x1]
      %v446 = vunpack.c.0.s8 %v438
      %v447 = vunpack.c.0.s8 %v439
      %v448 = vunpack.c.0.s8 %v440
      %v449 = vunpack.c.0.s8 %v441
      %v450 = vunpack.c.0.s8 %v442
      %v451 = vunpack.c.0.s8 %v443
      %v452 = vunpack.c.0.s8 %v444
      %v453 = vunpack.c.0.s8 %v445
      %v454 = vcvt.s32.f32 %v446
      %v455 = vcvt.s32.f32 %v447
      %v456 = vcvt.s32.f32 %v448
      %v457 = vcvt.s32.f32 %v449
      %v458 = vcvt.s32.f32 %v450
      %v459 = vcvt.s32.f32 %v451
      %v460 = vcvt.s32.f32 %v452
      %v461 = vcvt.s32.f32 %v453
      %v470 = vcombine.low %v454, %v455
      %v471 = vcombine.low %v456, %v457
      %v472 = vcombine.low %v458, %v459
      %v473 = vcombine.low %v460, %v461
      %v478 = vsel %vm398, %v470, 0.0
      %v479 = vsel %vm399, %v471, 0.0
      %v480 = vsel %vm400, %v472, 0.0
      %v481 = vsel %vm401, %v473, 0.0
      %v482 = vmul.f32 %v434, 2.0
      %v483 = vmul.f32 %v435, 2.0
      %v484 = vmul.f32 %v436, 2.0
      %v485 = vmul.f32 %v437, 2.0
      %v486 = vsub.f32 %v482, 1.0
      %v487 = vsub.f32 %v483, 1.0
      %v488 = vsub.f32 %v484, 1.0
      %v489 = vsub.f32 %v485, 1.0
      %v490 = vmul.f32 %v478, 2.0
      %v491 = vmul.f32 %v479, 2.0
      %v492 = vmul.f32 %v480, 2.0
      %v493 = vmul.f32 %v481, 2.0
      %v494 = vsub.f32 1.0, %v490
      %v495 = vsub.f32 1.0, %v491
      %v496 = vsub.f32 1.0, %v492
      %v497 = vsub.f32 1.0, %v493
      %v498 = vmul.f32 %v486, %v494
      %v499 = vmul.f32 %v487, %v495
      %v500 = vmul.f32 %v488, %v496
      %v501 = vmul.f32 %v489, %v497
      %v502 = vmax.f32 %v498, 0.0
      %v503 = vmax.f32 %v499, 0.0
      %v504 = vmax.f32 %v500, 0.0
      %v505 = vmax.f32 %v501, 0.0
      %v506 = vand.u32 2147483647, %v498
      %v507 = vand.u32 2147483647, %v499
      %v508 = vand.u32 2147483647, %v500
      %v509 = vand.u32 2147483647, %v501
      %v510 = vsub.f32 0.0, %v506
      %v511 = vsub.f32 0.0, %v507
      %v512 = vsub.f32 0.0, %v508
      %v513 = vsub.f32 0.0, %v509
      %v514 = vmul.f32 %v510, 1.442695
      %v515 = vpow.pop %v514
      %v516 = vmul.f32 %v511, 1.442695
      %v517 = vpow.pop %v516
      %v518 = vmul.f32 %v512, 1.442695
      %v519 = vpow.pop %v518
      %v520 = vmul.f32 %v513, 1.442695
      %v521 = vpow.pop %v520
      %v522 = vadd.f32 %v515, 1.0
      %v523 = vlog2.pop %v522
      %v524 = vmul.f32 %v523, 0.6931472
      %v525 = vmul.f32 -0.5, %v515
      %v526 = vadd.f32 %v525, 1.0
      %v527 = vmul.f32 %v526, %v515
      %v528 = vand.u32 2147483647, %v515
      %vm529 = vcmp.lt.f32.partialorder %v528, 0.0004427343
      %v530 = vsel %vm529, %v527, %v524
      %v531 = vadd.f32 %v517, 1.0
      %v532 = vlog2.pop %v531
      %v533 = vmul.f32 %v532, 0.6931472
      %v534 = vmul.f32 -0.5, %v517
      %v535 = vadd.f32 %v534, 1.0
      %v536 = vmul.f32 %v535, %v517
      %v537 = vand.u32 2147483647, %v517
      %vm538 = vcmp.lt.f32.partialorder %v537, 0.0004427343
      %v539 = vsel %vm538, %v536, %v533
      %v540 = vadd.f32 %v519, 1.0
      %v541 = vlog2.pop %v540
      %v542 = vmul.f32 %v541, 0.6931472
      %v543 = vmul.f32 -0.5, %v519
      %v544 = vadd.f32 %v543, 1.0
      %v545 = vmul.f32 %v544, %v519
      %v546 = vand.u32 2147483647, %v519
      %vm547 = vcmp.lt.f32.partialorder %v546, 0.0004427343
      %v548 = vsel %vm547, %v545, %v542
      %v549 = vadd.f32 %v521, 1.0
      %v550 = vlog2.pop %v549
      %v551 = vmul.f32 %v550, 0.6931472
      %v552 = vmul.f32 -0.5, %v521
      %v553 = vadd.f32 %v552, 1.0
      %v554 = vmul.f32 %v553, %v521
      %v555 = vand.u32 2147483647, %v521
      %vm556 = vcmp.lt.f32.partialorder %v555, 0.0004427343
      %v557 = vsel %vm556, %v554, %v551
      %v558 = vadd.f32 %v502, %v530
      %v559 = vadd.f32 %v503, %v539
      %v560 = vadd.f32 %v504, %v548
      %v561 = vadd.f32 %v505, %v557
      %v562 = vsel %vm398, %v558, 0.0
      %v563 = vsel %vm399, %v559, 0.0
      %v564 = vsel %vm400, %v560, 0.0
      %v565 = vsel %vm401, %v561, 0.0
      %v566 = vld [vmem:[#allocation2] sm:$0xff]
      %v567 = vadd.f32 %v562, %v563
      %v568 = vadd.f32 %v567, %v564
      %v569 = vadd.f32 %v568, %v565
      %v570 = vadd.f32 %v566, %v569
      %571 = vst [vmem:[#allocation2] sm:$0xff] %v570
      %v572 = vld [vmem:[#allocation3] sm:$0xff]
      %v573 = vmul.f32 %v478, %v562
      %v574 = vmul.f32 %v479, %v563
      %v575 = vmul.f32 %v480, %v564
      %v576 = vmul.f32 %v481, %v565
      %v577 = vadd.f32 %v573, %v574
      %v578 = vadd.f32 %v577, %v575
      %v579 = vadd.f32 %v578, %v576
      %v580 = vadd.f32 %v572, %v579
      %581 = vst [vmem:[#allocation3] sm:$0xff] %v580
      %v582 = vld [vmem:[#allocation4] sm:$0xff]
      %v583 = vadd.f32 %v478, %v479
      %v584 = vadd.f32 %v583, %v480
      %v585 = vadd.f32 %v584, %v481
      %v586 = vadd.f32 %v582, %v585
      %587 = vst [vmem:[#allocation4] sm:$0xff] %v586
    $region25: #{tpu_custom_call.1} parent=1 // pred_fallthru
      _
    // Predicated region
    $region26: #{tpu_custom_call.1} parent=1 // pred_check
      %p588 = pneg %p85
    $region27: #{tpu_custom_call.1} parent=1 // pred_check_branch
      %590 = sbr.rel (%p588) target = $region29
    $region28: #{tpu_custom_call.1} parent=1 // pred_region
      %v591 = vld [vmem:[#allocation2] sm:$0xff]
      %v592 = vrot.slane %v591, 4
      %v593 = vadd.f32 %v591, %v592
      %v594 = vrot.slane %v593, 2
      %v595 = vadd.f32 %v593, %v594
      %v596 = vrot.slane %v595, 1
      %v597 = vadd.f32 %v595, %v596
      %598 = vst [vmem:[#allocation8] sm:$0x1] %v597
      %v599 = vld [vmem:[#allocation3] sm:$0xff]
      %v600 = vrot.slane %v599, 4
      %v601 = vadd.f32 %v599, %v600
      %v602 = vrot.slane %v601, 2
      %v603 = vadd.f32 %v601, %v602
      %v604 = vrot.slane %v603, 1
      %v605 = vadd.f32 %v603, %v604
      %606 = vst [vmem:[#allocation9] sm:$0x1] %v605
      %v607 = vld [vmem:[#allocation4] sm:$0xff]
      %v608 = vrot.slane %v607, 4
      %v609 = vadd.f32 %v607, %v608
      %v610 = vrot.slane %v609, 2
      %v611 = vadd.f32 %v609, %v610
      %v612 = vrot.slane %v611, 1
      %v613 = vadd.f32 %v611, %v612
      %614 = vst [vmem:[#allocation11] sm:$0x1] %v613
    $region29: #{tpu_custom_call.1} parent=1 // pred_fallthru
      _
    // Predicated region
    $region30: #{tpu_custom_call.1} parent=1 // pred_check
      _
    $region31: #{tpu_custom_call.1} parent=1 // pred_check_branch
      %616 = sbr.rel (0) target = $region33
    $region32: #{tpu_custom_call.1} parent=1 // pred_region
      %s618 = ssub.s32 16, 16
      %619 = vsyncadd [#allocation7], %s618
      %s621 = sshll.u32 [#allocation8], 4
      %s622 = int_to_ptr.vmem [resolvable:$true] %s621
      %624 = dma.vmem_to_hbm [thread:$0]  %s622, 16, %s2, [#allocation7]
    $region33: #{tpu_custom_call.1} parent=1 // pred_fallthru
      _
    // Predicated region
    $region34: #{tpu_custom_call.1} parent=1 // pred_check
      _
    $region35: #{tpu_custom_call.1} parent=1 // pred_check_branch
      %626 = sbr.rel (0) target = $region37
    $region36: #{tpu_custom_call.1} parent=1 // pred_region
      %s628 = ssub.s32 16, 16
      %629 = vsyncadd [#allocation10], %s628
      %s631 = sshll.u32 [#allocation9], 4
      %s632 = int_to_ptr.vmem [resolvable:$true] %s631
      %634 = dma.vmem_to_hbm [thread:$0]  %s632, 16, %s3, [#allocation10]
    $region37: #{tpu_custom_call.1} parent=1 // pred_fallthru
      _
    // Predicated region
    $region38: #{tpu_custom_call.1} parent=1 // pred_check
      _
    $region39: #{tpu_custom_call.1} parent=1 // pred_check_branch
      %636 = sbr.rel (0) target = $region41
    $region40: #{tpu_custom_call.1} parent=1 // pred_region
      %s638 = ssub.s32 16, 16
      %639 = vsyncadd [#allocation10], %s638
      %s641 = sshll.u32 [#allocation11], 4
      %s642 = int_to_ptr.vmem [resolvable:$true] %s641
      %644 = dma.vmem_to_hbm [thread:$0]  %s642, 16, %s4, [#allocation10]
    $region41: #{tpu_custom_call.1} parent=1 // pred_fallthru
      _
    // Predicated region
    $region42: #{tpu_custom_call.1} parent=1 // pred_check
      _
    $region43: #{tpu_custom_call.1} parent=1 // pred_check_branch
      %646 = sbr.rel (0) target = $region45
    $region44: #{tpu_custom_call.1} parent=1 // pred_region
      %647 = dma.done [#allocation7], 16
    $region45: #{tpu_custom_call.1} parent=1 // pred_fallthru
      _
    // Predicated region
    $region46: #{tpu_custom_call.1} parent=1 // pred_check
      _
    $region47: #{tpu_custom_call.1} parent=1 // pred_check_branch
      %649 = sbr.rel (0) target = $region49
    $region48: #{tpu_custom_call.1} parent=1 // pred_region
      %650 = dma.done [#allocation10], 16
    $region49: #{tpu_custom_call.1} parent=1 // pred_fallthru
      _
    // Predicated region
    $region50: #{tpu_custom_call.1} parent=1 // pred_check
      _
    $region51: #{tpu_custom_call.1} parent=1 // pred_check_branch
      %652 = sbr.rel (0) target = $region53
    $region52: #{tpu_custom_call.1} parent=1 // pred_region
      %653 = dma.done [#allocation10], 16
    $region53: #{tpu_custom_call.1} parent=1 // pred_fallthru
      _
    %654 = vsyncpa [#allocation6], 1
    %655 = vsyncpa [#allocation7], 1
    %656 = vsyncpa [#allocation10], 1

</llo_original>
